<compile_context>
chip_gen: v5e
topology: v5e:2x2
jax: 0.10.0
libtpu: 0.0.40
codegen_flags: <defaults>
</compile_context>

<pallas_src>
import functools

import jax
import jax.numpy as jnp
from jax import lax
from jax.experimental import pallas as pl
from jax.experimental.pallas import tpu as pltpu


def _transe_chunk_kernel(h_ref, r_ref, t_ref, ent_ref, rel_ref, out_ref,
                         diff_ref, *, tb):
    """Processes TB gathered triples per grid step.

    h_ref/r_ref/t_ref : (B_pad,) int32 in SMEM (scalar prefetch)
    ent_ref           : (num_entities, D) VMEM-resident entity table
    rel_ref           : (num_relations, D) VMEM-resident relation table
    out_ref           : (1, TB) float32 lane-dense distances for this chunk
    diff_ref          : (TB, D) float32 VMEM scratch holding E[h]+R[r]-E[t]
    """
    c = pl.program_id(0)
    base = c * tb

    def gather_row(i, carry):
        hi = h_ref[base + i]
        ri = r_ref[base + i]
        ti = t_ref[base + i]
        eh = ent_ref[pl.ds(hi, 1), :].astype(jnp.float32)   # (1, D)
        er = rel_ref[pl.ds(ri, 1), :].astype(jnp.float32)   # (1, D)
        et = ent_ref[pl.ds(ti, 1), :].astype(jnp.float32)   # (1, D)
        diff_ref[pl.ds(i, 1), :] = eh + er - et
        return carry

    lax.fori_loop(0, tb, gather_row, 0)

    d = diff_ref[...]                       # (TB, D) float32
    sq = jnp.sum(d * d, axis=-1)            # (TB,)
    # Forward-only: sqrt(0)=0 is fine.  Guard with jnp.maximum(sq, eps) before
    # adding any backward pass (gradient of sqrt at 0 is undefined).
    out_ref[...] = jnp.sqrt(sq)[None, :]    # (1, TB) lane-dense store


def projection_module_forward(entity_emb, relation_emb, h, r, t, *, tb=128):
    """ProjectionModule.forward((h, r, t)) for TransE (scoring_fct_norm=2).

    entity_emb   : (num_entities, D) float32 or bfloat16
    relation_emb : (num_relations, D) float32 or bfloat16
    h, r, t      : (B,) integer indices
    returns      : (B, 1) float32, || E[h] + R[r] - E[t] ||_2
                   ( == -score of TransE, matching `x = -self.kg_module(...)`)
    """
    B = h.shape[0]
    num_entities, D = entity_emb.shape
    num_relations, D2 = relation_emb.shape
    assert D == D2, (D, D2)

    # Pad batch to a multiple of TB; padded rows gather row 0 (always valid)
    # and are sliced off below.
    n_chunks = -(-B // tb)
    b_pad = n_chunks * tb
    pad = b_pad - B
    h32 = h.astype(jnp.int32)
    r32 = r.astype(jnp.int32)
    t32 = t.astype(jnp.int32)
    if pad:
        zeros = jnp.zeros((pad,), jnp.int32)
        h32 = jnp.concatenate([h32, zeros])
        r32 = jnp.concatenate([r32, zeros])
        t32 = jnp.concatenate([t32, zeros])

    # Conservative VMEM budget check for the resident-table path (tables are
    # double-buffered by the pipeline even with a constant index_map).
    itemsize = jnp.dtype(entity_emb.dtype).itemsize
    lane_d = -(-D // 128) * 128
    tbl_rows = (-(-num_entities // 8) * 8) + (-(-num_relations // 8) * 8)
    table_bytes = tbl_rows * lane_d * itemsize
    working_bytes = tb * lane_d * 4 + 4 * tb * 4
    if 2 * table_bytes + working_bytes > 12 * 2**20:
        # TODO(synk): manual HBM row-gather fallback for tables exceeding VMEM.
        raise NotImplementedError(
            "embedding tables too large for the VMEM-resident gather path")

    kernel = functools.partial(_transe_chunk_kernel, tb=tb)

    out = pl.pallas_call(
        kernel,
        out_shape=jax.ShapeDtypeStruct((1, b_pad), jnp.float32),
        grid_spec=pltpu.PrefetchScalarGridSpec(
            num_scalar_prefetch=3,
            grid=(n_chunks,),
            in_specs=[
                # Entity table: constant index_map => fetched once, stays
                # VMEM-resident; shared by the E[h] and E[t] gathers.
                pl.BlockSpec((num_entities, D), lambda c, hh, rr, tt: (0, 0)),
                # Relation table, likewise resident.
                pl.BlockSpec((num_relations, D), lambda c, hh, rr, tt: (0, 0)),
            ],
            out_specs=pl.BlockSpec((1, tb), lambda c, hh, rr, tt: (0, c)),
            scratch_shapes=[pltpu.VMEM((tb, D), jnp.float32)],
        ),
        compiler_params=pltpu.CompilerParams(
            dimension_semantics=("parallel",),
        ),
    )(h32, r32, t32, entity_emb, relation_emb)

    return out[0, :B].reshape(B, 1)


def _reference(entity_emb, relation_emb, h, r, t):
    d = (entity_emb[h] + relation_emb[r] - entity_emb[t]).astype(jnp.float32)
    return jnp.sqrt(jnp.sum(d * d, axis=-1, keepdims=True))


if __name__ == "__main__":
    # Deterministic synthetic "KGE model" parameters (no checkpoint loading).
    key = jax.random.PRNGKey(0)
    k_ent, k_rel, k_h, k_r, k_t = jax.random.split(key, 5)

    num_entities = 16
    num_relations = 8
    embedding_dim = 32
    batch = 8

    entity_emb = jax.random.normal(k_ent, (num_entities, embedding_dim), jnp.float32)
    relation_emb = jax.random.normal(k_rel, (num_relations, embedding_dim), jnp.float32)

    h = jax.random.randint(k_h, (batch,), 0, num_entities, dtype=jnp.int32)
    r = jax.random.randint(k_r, (batch,), 0, num_relations, dtype=jnp.int32)
    t = jax.random.randint(k_t, (batch,), 0, num_entities, dtype=jnp.int32)

    out = projection_module_forward(entity_emb, relation_emb, h, r, t)
    out = jax.block_until_ready(out)

    ref = _reference(entity_emb, relation_emb, h, r, t)
    assert out.shape == (batch, 1), out.shape
    assert jnp.allclose(out, ref, atol=1e-5, rtol=1e-5), (out, ref)

    print("KERNEL_OK")
</pallas_src>

<mosaic_0001>
module attributes {stable_mosaic.version = 11 : i64} {
  func.func @_transe_chunk_kernel(%arg0: i32, %arg1: memref<128xi32, #tpu.memory_space<smem>>, %arg2: memref<128xi32, #tpu.memory_space<smem>>, %arg3: memref<128xi32, #tpu.memory_space<smem>>, %arg4: memref<16x32xf32, #tpu.memory_space<vmem>>, %arg5: memref<8x32xf32, #tpu.memory_space<vmem>>, %arg6: memref<1x128xf32, #tpu.memory_space<vmem>>, %arg7: memref<128x32xf32, #tpu.memory_space<vmem>>) attributes {dimension_semantics = [#tpu.dimension_semantics<parallel>], iteration_bounds = array<i64: 1>, scalar_prefetch = 3 : i64, scratch_operands = 1 : i64, tpu.core_type = #tpu.core_type<tc>, window_params = [{pipeline_mode = #tpu.pipeline_mode<synchronous>, transform_indices = @transform_0, window_bounds = array<i64: 16, 32>}, {pipeline_mode = #tpu.pipeline_mode<synchronous>, transform_indices = @transform_1, window_bounds = array<i64: 8, 32>}, {transform_indices = @transform_2, window_bounds = array<i64: 1, 128>}]} {
    %c128_i32 = arith.constant 128 : i32
    %0 = arith.muli %arg0, %c128_i32 : i32
    %c0_i32 = arith.constant 0 : i32
    %c128_i32_0 = arith.constant 128 : i32
    %1 = arith.addi %c0_i32, %c128_i32_0 : i32
    %c1_i32 = arith.constant 1 : i32
    scf.for %arg8 = %c0_i32 to %1 step %c1_i32  : i32 {
      %8 = arith.addi %0, %arg8 : i32
      %9 = arith.index_cast %8 : i32 to index
      %10 = memref.load %arg1[%9] : memref<128xi32, #tpu.memory_space<smem>>
      %11 = arith.addi %0, %arg8 : i32
      %12 = arith.index_cast %11 : i32 to index
      %13 = memref.load %arg2[%12] : memref<128xi32, #tpu.memory_space<smem>>
      %14 = arith.addi %0, %arg8 : i32
      %15 = arith.index_cast %14 : i32 to index
      %16 = memref.load %arg3[%15] : memref<128xi32, #tpu.memory_space<smem>>
      %17 = arith.index_cast %10 : i32 to index
      %c0_5 = arith.constant 0 : index
      %18 = vector.load %arg4[%17, %c0_5] : memref<16x32xf32, #tpu.memory_space<vmem>>, vector<1x32xf32>
      %19 = arith.index_cast %13 : i32 to index
      %c0_6 = arith.constant 0 : index
      %20 = vector.load %arg5[%19, %c0_6] : memref<8x32xf32, #tpu.memory_space<vmem>>, vector<1x32xf32>
      %21 = arith.index_cast %16 : i32 to index
      %c0_7 = arith.constant 0 : index
      %22 = vector.load %arg4[%21, %c0_7] : memref<16x32xf32, #tpu.memory_space<vmem>>, vector<1x32xf32>
      %23 = arith.addf %18, %20 : vector<1x32xf32>
      %24 = arith.subf %23, %22 : vector<1x32xf32>
      %25 = arith.index_cast %arg8 : i32 to index
      %c0_8 = arith.constant 0 : index
      %26 = vector.load %arg7[%25, %c0_8] : memref<128x32xf32, #tpu.memory_space<vmem>>, vector<1x32xf32>
      tpu.vector_store %arg7[%25, %c0_8], %24 {strides = array<i32>} : memref<128x32xf32, #tpu.memory_space<vmem>>, vector<1x32xf32>,
    }
    %c128_i32_1 = arith.constant 128 : i32
    %c0 = arith.constant 0 : index
    %c0_2 = arith.constant 0 : index
    %2 = vector.load %arg7[%c0, %c0_2] : memref<128x32xf32, #tpu.memory_space<vmem>>, vector<128x32xf32>
    %3 = arith.mulf %2, %2 : vector<128x32xf32>
    %cst = arith.constant dense<0.000000e+00> : vector<128xf32>
    %4 = vector.multi_reduction <add>, %3, %cst [1] : vector<128x32xf32> to vector<128xf32>
    %5 = math.sqrt %4 : vector<128xf32>
    %6 = vector.shape_cast %5 : vector<128xf32> to vector<1x128xf32>
    %c0_3 = arith.constant 0 : index
    %c0_4 = arith.constant 0 : index
    %7 = vector.load %arg6[%c0_3, %c0_4] : memref<1x128xf32, #tpu.memory_space<vmem>>, vector<1x128xf32>
    tpu.vector_store %arg6[%c0_3, %c0_4], %6 {strides = array<i32>} : memref<1x128xf32, #tpu.memory_space<vmem>>, vector<1x128xf32>,
    return
  }
  func.func @transform_0(%arg0: i32, %arg1: memref<128xi32, #tpu.memory_space<smem>>, %arg2: memref<128xi32, #tpu.memory_space<smem>>, %arg3: memref<128xi32, #tpu.memory_space<smem>>) -> (i32, i32) {
    %c0_i32 = arith.constant 0 : i32
    %c0_i32_0 = arith.constant 0 : i32
    %c0_i32_1 = arith.constant 0 : i32
    return %c0_i32, %c0_i32_0 : i32, i32
  }
  func.func @transform_1(%arg0: i32, %arg1: memref<128xi32, #tpu.memory_space<smem>>, %arg2: memref<128xi32, #tpu.memory_space<smem>>, %arg3: memref<128xi32, #tpu.memory_space<smem>>) -> (i32, i32) {
    %c0_i32 = arith.constant 0 : i32
    %c0_i32_0 = arith.constant 0 : i32
    %c0_i32_1 = arith.constant 0 : i32
    return %c0_i32, %c0_i32_0 : i32, i32
  }
  func.func @transform_2(%arg0: i32, %arg1: memref<128xi32, #tpu.memory_space<smem>>, %arg2: memref<128xi32, #tpu.memory_space<smem>>, %arg3: memref<128xi32, #tpu.memory_space<smem>>) -> (i32, i32) {
    %c0_i32 = arith.constant 0 : i32
    %c0_i32_0 = arith.constant 0 : i32
    return %c0_i32, %arg0 : i32, i32
  }
}

</mosaic_0001>

<llo_original>
// kernel: tpu_custom_call.1
$region0: #{tpu_custom_call.1}
  #allocation0 [shape = 'u32[]', space=smem, size = 0x4, offset = 0x4, fixed_abs, tag = 'smem constant byte address 0x4 - core index']
  #allocation1 [shape = 'u32[72,128]{1,0:T(1,128)}', space=vmem, size = 0x9000, scoped, tag = 'internal scratch']
  #allocation2 [shape = 'f32[128,32]{1,0:T(8,128)}', space=vmem, size = 0x10000, scoped, tag = 'scratch operand']
  #allocation3 [shape = 's32[1]{0}', space=sflag, size = 0x4, scoped, tag = 'scoped memory for tpu_custom_call.1']
  #allocation4 [shape = 'u8[512]{0}', space=smem, size = 0x200, scoped, tag = 'prefetched SMEM operand 0']
  #allocation5 [shape = 'u8[512]{0}', space=smem, size = 0x200, scoped, tag = 'prefetched SMEM operand 1']
  #allocation6 [shape = 'u8[512]{0}', space=smem, size = 0x200, scoped, tag = 'prefetched SMEM operand 2']
  %s0 = inlined_call_operand.hbm [shape: s32[128], index: 0, kind: input, shape index: {}]
  %s1 = inlined_call_operand.hbm [shape: s32[128], index: 1, kind: input, shape index: {}]
  %s2 = inlined_call_operand.vmem [shape: s32[128], index: 2, kind: input, shape index: {}]
  %s3 = inlined_call_operand.hbm [shape: f32[16,32], index: 3, kind: input, shape index: {}]
  %s4 = inlined_call_operand.hbm [shape: f32[8,32], index: 4, kind: input, shape index: {}]
  %s5 = inlined_call_operand.hbm [shape: f32[1,128], index: 5, kind: output, shape index: {}]
  %s6 = sld [smem:[#allocation0]]
  $region33: #{tpu_custom_call.1} parent=0
    _
  %s8 = ssub.s32 1, %s6
  %s9 = scalar_select 0, %s8, %s6
  %s11 = sshll.u32 %s0, 4
  %s12 = int_to_ptr.hbm [resolvable:$true] %s11
  %14 = dma.hbm_to_smem %s12, 16, [#allocation4], [#allocation3]
  %s16 = sshll.u32 %s1, 4
  %s17 = int_to_ptr.hbm [resolvable:$true] %s16
  %19 = dma.hbm_to_smem %s17, 16, [#allocation5], [#allocation3]
  %s21 = sshll.u32 %s2, 4
  %s22 = int_to_ptr.vmem [resolvable:$true] %s21
  %24 = dma.vmem_to_smem %s22, 16, [#allocation6], [#allocation3]
  %26 = dma.done [#allocation3], 48
  %27 = sfence
  $region1: #{tpu_custom_call.1} parent=0
    #allocation7 [shape = 'u8[8192]{0}', space=vmem, size = 0x2000, scoped, tag = 'input window, operand 3, single buffered']
    #allocation8 [shape = 's32[1]{0}', space=sflag, size = 0x4, scoped, tag = 'scoped memory for tpu_custom_call.1']
    #allocation9 [shape = 's32[1]{0}', space=sflag, size = 0x4, scoped, tag = 'scoped memory for tpu_custom_call.1']
    #allocation10 [shape = 'u8[4096]{0}', space=vmem, size = 0x1000, scoped, tag = 'input window, operand 4, single buffered']
    #allocation11 [shape = 's32[1]{0}', space=sflag, size = 0x4, scoped, tag = 'scoped memory for tpu_custom_call.1']
    #allocation12 [shape = 'u8[512]{0}', space=vmem, size = 0x400, scoped, tag = 'output window, operand 0, single buffered']
    %28 = vsyncpa [#allocation8], 0
    %29 = vsyncpa [#allocation11], 0
    %30 = vsyncpa [#allocation9], 0
    // Predicated region
    $region2: #{tpu_custom_call.1} parent=1 // pred_check
      _
    $region3: #{tpu_custom_call.1} parent=1 // pred_check_branch
      %32 = sbr.rel (0) target = $region5
    $region4: #{tpu_custom_call.1} parent=1 // pred_region
      %34 = vsyncadd [#allocation8], 0
      %s35 = sshll.u32 %s3, 4
      %s36 = int_to_ptr.hbm [resolvable:$true] %s35
      %s37 = sshll.u32 [#allocation7], 4
      %s38 = int_to_ptr.vmem [resolvable:$true] %s37
      %43 = dma.hbm_to_vmem [thread:$0]  %s36, 256, %s38, [#allocation8], 128, 128, 8
    $region5: #{tpu_custom_call.1} parent=1 // pred_fallthru
      _
    // Predicated region
    $region6: #{tpu_custom_call.1} parent=1 // pred_check
      _
    $region7: #{tpu_custom_call.1} parent=1 // pred_check_branch
      %45 = sbr.rel (0) target = $region9
    $region8: #{tpu_custom_call.1} parent=1 // pred_region
      %47 = vsyncadd [#allocation11], 0
      %s49 = sshll.u32 %s4, 4
      %s50 = int_to_ptr.hbm [resolvable:$true] %s49
      %s51 = sshll.u32 [#allocation10], 4
      %s52 = int_to_ptr.vmem [resolvable:$true] %s51
      %54 = dma.hbm_to_vmem [thread:$0]  %s50, 128, %s52, [#allocation11]
    $region9: #{tpu_custom_call.1} parent=1 // pred_fallthru
      _
    // Predicated region
    $region10: #{tpu_custom_call.1} parent=1 // pred_check
      _
    $region11: #{tpu_custom_call.1} parent=1 // pred_check_branch
      %56 = sbr.rel (0) target = $region13
    $region12: #{tpu_custom_call.1} parent=1 // pred_region
      %58 = dma.done [#allocation8], 256
    $region13: #{tpu_custom_call.1} parent=1 // pred_fallthru
      _
    // Predicated region
    $region14: #{tpu_custom_call.1} parent=1 // pred_check
      _
    $region15: #{tpu_custom_call.1} parent=1 // pred_check_branch
      %60 = sbr.rel (0) target = $region17
    $region16: #{tpu_custom_call.1} parent=1 // pred_region
      %62 = dma.done [#allocation11], 128
    $region17: #{tpu_custom_call.1} parent=1 // pred_fallthru
      _
    %s63 = smul.u32 0, 128
    loop: start=0, step=1, limit=128
    $region18: #{tpu_custom_call.1} parent=1 // loop_pre_header
      _
    $region19: #{tpu_custom_call.1} parent=1 // loop_header
      %s65 = sphi 0, %s69
      %p66 = scmp.ge.s32.totalorder %s65, 128
    $region20: #{tpu_custom_call.1} parent=1 // loop_header_branch
      %68 = sbr.rel (%p66) target = $region24
    $region21: #{tpu_custom_call.1} parent=1 // loop_body
      %s70 = sadd.s32 %s63, %s65
      %s71 = sld [smem:[#allocation4 + %s70]]
      %s72 = sld [smem:[#allocation5 + %s70]]
      %s73 = sld [smem:[#allocation6 + %s70]]
      %s74 = scalar_lea.vmem [#allocation7], %s71
      %v75 = vld [vmem:[%s74] sm:$0x1]
      %s76 = scalar_lea.vmem [#allocation10], %s72
      %v77 = vld [vmem:[%s76] sm:$0x1]
      %s78 = scalar_lea.vmem [#allocation7], %s73
      %v79 = vld [vmem:[%s78] sm:$0x1]
      %v80 = vadd.f32 %v75, %v77
      %v81 = vsub.f32 %v80, %v79
      %s82 = scalar_lea.vmem [#allocation2], %s65
      %vm83 = vcmask 253952
      %84 = vst.msk [vmem:[%s82] sm:$0x1] %vm83, %v81
    $region22: #{tpu_custom_call.1} parent=1 // loop_footer
      %s69 = sadd.s32 1, %s65
    $region23: #{tpu_custom_call.1} parent=1 // loop_footer_branch
      %64 = sbr.rel target = $region19
    $region24: #{tpu_custom_call.1} parent=1 // loop_exit
      _
    %v85 = vld [vmem:[#allocation2] sm:$0xff]
    %v86 = vld [vmem:[#allocation2 + $0x8] sm:$0xff]
    %v87 = vld [vmem:[#allocation2 + $0x10] sm:$0xff]
    %v88 = vld [vmem:[#allocation2 + $0x18] sm:$0xff]
    %v89 = vld [vmem:[#allocation2 + $0x20] sm:$0xff]
    %v90 = vld [vmem:[#allocation2 + $0x28] sm:$0xff]
    %v91 = vld [vmem:[#allocation2 + $0x30] sm:$0xff]
    %v92 = vld [vmem:[#allocation2 + $0x38] sm:$0xff]
    %v93 = vld [vmem:[#allocation2 + $0x40] sm:$0xff]
    %v94 = vld [vmem:[#allocation2 + $0x48] sm:$0xff]
    %v95 = vld [vmem:[#allocation2 + $0x50] sm:$0xff]
    %v96 = vld [vmem:[#allocation2 + $0x58] sm:$0xff]
    %v97 = vld [vmem:[#allocation2 + $0x60] sm:$0xff]
    %v98 = vld [vmem:[#allocation2 + $0x68] sm:$0xff]
    %v99 = vld [vmem:[#allocation2 + $0x70] sm:$0xff]
    %v100 = vld [vmem:[#allocation2 + $0x78] sm:$0xff]
    %v101 = vmul.f32 %v85, %v85
    %v102 = vmul.f32 %v86, %v86
    %v103 = vmul.f32 %v87, %v87
    %v104 = vmul.f32 %v88, %v88
    %v105 = vmul.f32 %v89, %v89
    %v106 = vmul.f32 %v90, %v90
    %v107 = vmul.f32 %v91, %v91
    %v108 = vmul.f32 %v92, %v92
    %v109 = vmul.f32 %v93, %v93
    %v110 = vmul.f32 %v94, %v94
    %v111 = vmul.f32 %v95, %v95
    %v112 = vmul.f32 %v96, %v96
    %v113 = vmul.f32 %v97, %v97
    %v114 = vmul.f32 %v98, %v98
    %v115 = vmul.f32 %v99, %v99
    %v116 = vmul.f32 %v100, %v100
    %vm117 = vcmask 261120
    %v118 = vsel %vm117, %v101, 0.0
    %119 = vadd.xlane.f32.xlu0 %v118
    %v120 = vpop.xlane.xlu0 %119
    %v121 = vsel %vm117, %v102, 0.0
    %122 = vadd.xlane.f32.xlu0 %v121
    %v123 = vpop.xlane.xlu0 %122
    %v124 = vsel %vm117, %v103, 0.0
    %125 = vadd.xlane.f32.xlu0 %v124
    %v126 = vpop.xlane.xlu0 %125
    %v127 = vsel %vm117, %v104, 0.0
    %128 = vadd.xlane.f32.xlu0 %v127
    %v129 = vpop.xlane.xlu0 %128
    %v130 = vsel %vm117, %v105, 0.0
    %131 = vadd.xlane.f32.xlu0 %v130
    %v132 = vpop.xlane.xlu0 %131
    %v133 = vsel %vm117, %v106, 0.0
    %134 = vadd.xlane.f32.xlu0 %v133
    %v135 = vpop.xlane.xlu0 %134
    %v136 = vsel %vm117, %v107, 0.0
    %137 = vadd.xlane.f32.xlu0 %v136
    %v138 = vpop.xlane.xlu0 %137
    %v139 = vsel %vm117, %v108, 0.0
    %140 = vadd.xlane.f32.xlu0 %v139
    %v141 = vpop.xlane.xlu0 %140
    %v142 = vsel %vm117, %v109, 0.0
    %143 = vadd.xlane.f32.xlu0 %v142
    %v144 = vpop.xlane.xlu0 %143
    %v145 = vsel %vm117, %v110, 0.0
    %146 = vadd.xlane.f32.xlu0 %v145
    %v147 = vpop.xlane.xlu0 %146
    %v148 = vsel %vm117, %v111, 0.0
    %149 = vadd.xlane.f32.xlu0 %v148
    %v150 = vpop.xlane.xlu0 %149
    %v151 = vsel %vm117, %v112, 0.0
    %152 = vadd.xlane.f32.xlu0 %v151
    %v153 = vpop.xlane.xlu0 %152
    %v154 = vsel %vm117, %v113, 0.0
    %155 = vadd.xlane.f32.xlu0 %v154
    %v156 = vpop.xlane.xlu0 %155
    %v157 = vsel %vm117, %v114, 0.0
    %158 = vadd.xlane.f32.xlu0 %v157
    %v159 = vpop.xlane.xlu0 %158
    %v160 = vsel %vm117, %v115, 0.0
    %161 = vadd.xlane.f32.xlu0 %v160
    %v162 = vpop.xlane.xlu0 %161
    %v163 = vsel %vm117, %v116, 0.0
    %164 = vadd.xlane.f32.xlu0 %v163
    %v165 = vpop.xlane.xlu0 %164
    %v166 = vrsqrt.pop %v120
    %v167 = vmul.f32 %v166, %v120
    %v168 = vmul.f32 %v167, %v166
    %v169 = vmul.f32 0.5, %v168
    %v170 = vsub.f32 1.5, %v169
    %v171 = vmul.f32 %v166, %v170
    %v172 = vmul.f32 %v120, %v171
    %vm173 = vcmp.eq.f32.partialorder %v120, inf
    %v174 = vsel %vm173, %v120, %v172
    %vm175 = vcmp.eq.f32.partialorder %v120, 0.0
    %v176 = vand.u32 %v120, 2147483648
    %v177 = vsel %vm175, %v176, %v174
    %v178 = vrsqrt.pop %v123
    %v179 = vmul.f32 %v178, %v123
    %v180 = vmul.f32 %v179, %v178
    %v181 = vmul.f32 0.5, %v180
    %v182 = vsub.f32 1.5, %v181
    %v183 = vmul.f32 %v178, %v182
    %v184 = vmul.f32 %v123, %v183
    %vm185 = vcmp.eq.f32.partialorder %v123, inf
    %v186 = vsel %vm185, %v123, %v184
    %vm187 = vcmp.eq.f32.partialorder %v123, 0.0
    %v188 = vand.u32 %v123, 2147483648
    %v189 = vsel %vm187, %v188, %v186
    %v190 = vrsqrt.pop %v126
    %v191 = vmul.f32 %v190, %v126
    %v192 = vmul.f32 %v191, %v190
    %v193 = vmul.f32 0.5, %v192
    %v194 = vsub.f32 1.5, %v193
    %v195 = vmul.f32 %v190, %v194
    %v196 = vmul.f32 %v126, %v195
    %vm197 = vcmp.eq.f32.partialorder %v126, inf
    %v198 = vsel %vm197, %v126, %v196
    %vm199 = vcmp.eq.f32.partialorder %v126, 0.0
    %v200 = vand.u32 %v126, 2147483648
    %v201 = vsel %vm199, %v200, %v198
    %v202 = vrsqrt.pop %v129
    %v203 = vmul.f32 %v202, %v129
    %v204 = vmul.f32 %v203, %v202
    %v205 = vmul.f32 0.5, %v204
    %v206 = vsub.f32 1.5, %v205
    %v207 = vmul.f32 %v202, %v206
    %v208 = vmul.f32 %v129, %v207
    %vm209 = vcmp.eq.f32.partialorder %v129, inf
    %v210 = vsel %vm209, %v129, %v208
    %vm211 = vcmp.eq.f32.partialorder %v129, 0.0
    %v212 = vand.u32 %v129, 2147483648
    %v213 = vsel %vm211, %v212, %v210
    %v214 = vrsqrt.pop %v132
    %v215 = vmul.f32 %v214, %v132
    %v216 = vmul.f32 %v215, %v214
    %v217 = vmul.f32 0.5, %v216
    %v218 = vsub.f32 1.5, %v217
    %v219 = vmul.f32 %v214, %v218
    %v220 = vmul.f32 %v132, %v219
    %vm221 = vcmp.eq.f32.partialorder %v132, inf
    %v222 = vsel %vm221, %v132, %v220
    %vm223 = vcmp.eq.f32.partialorder %v132, 0.0
    %v224 = vand.u32 %v132, 2147483648
    %v225 = vsel %vm223, %v224, %v222
    %v226 = vrsqrt.pop %v135
    %v227 = vmul.f32 %v226, %v135
    %v228 = vmul.f32 %v227, %v226
    %v229 = vmul.f32 0.5, %v228
    %v230 = vsub.f32 1.5, %v229
    %v231 = vmul.f32 %v226, %v230
    %v232 = vmul.f32 %v135, %v231
    %vm233 = vcmp.eq.f32.partialorder %v135, inf
    %v234 = vsel %vm233, %v135, %v232
    %vm235 = vcmp.eq.f32.partialorder %v135, 0.0
    %v236 = vand.u32 %v135, 2147483648
    %v237 = vsel %vm235, %v236, %v234
    %v238 = vrsqrt.pop %v138
    %v239 = vmul.f32 %v238, %v138
    %v240 = vmul.f32 %v239, %v238
    %v241 = vmul.f32 0.5, %v240
    %v242 = vsub.f32 1.5, %v241
    %v243 = vmul.f32 %v238, %v242
    %v244 = vmul.f32 %v138, %v243
    %vm245 = vcmp.eq.f32.partialorder %v138, inf
    %v246 = vsel %vm245, %v138, %v244
    %vm247 = vcmp.eq.f32.partialorder %v138, 0.0
    %v248 = vand.u32 %v138, 2147483648
    %v249 = vsel %vm247, %v248, %v246
    %v250 = vrsqrt.pop %v141
    %v251 = vmul.f32 %v250, %v141
    %v252 = vmul.f32 %v251, %v250
    %v253 = vmul.f32 0.5, %v252
    %v254 = vsub.f32 1.5, %v253
    %v255 = vmul.f32 %v250, %v254
    %v256 = vmul.f32 %v141, %v255
    %vm257 = vcmp.eq.f32.partialorder %v141, inf
    %v258 = vsel %vm257, %v141, %v256
    %vm259 = vcmp.eq.f32.partialorder %v141, 0.0
    %v260 = vand.u32 %v141, 2147483648
    %v261 = vsel %vm259, %v260, %v258
    %v262 = vrsqrt.pop %v144
    %v263 = vmul.f32 %v262, %v144
    %v264 = vmul.f32 %v263, %v262
    %v265 = vmul.f32 0.5, %v264
    %v266 = vsub.f32 1.5, %v265
    %v267 = vmul.f32 %v262, %v266
    %v268 = vmul.f32 %v144, %v267
    %vm269 = vcmp.eq.f32.partialorder %v144, inf
    %v270 = vsel %vm269, %v144, %v268
    %vm271 = vcmp.eq.f32.partialorder %v144, 0.0
    %v272 = vand.u32 %v144, 2147483648
    %v273 = vsel %vm271, %v272, %v270
    %v274 = vrsqrt.pop %v147
    %v275 = vmul.f32 %v274, %v147
    %v276 = vmul.f32 %v275, %v274
    %v277 = vmul.f32 0.5, %v276
    %v278 = vsub.f32 1.5, %v277
    %v279 = vmul.f32 %v274, %v278
    %v280 = vmul.f32 %v147, %v279
    %vm281 = vcmp.eq.f32.partialorder %v147, inf
    %v282 = vsel %vm281, %v147, %v280
    %vm283 = vcmp.eq.f32.partialorder %v147, 0.0
    %v284 = vand.u32 %v147, 2147483648
    %v285 = vsel %vm283, %v284, %v282
    %v286 = vrsqrt.pop %v150
    %v287 = vmul.f32 %v286, %v150
    %v288 = vmul.f32 %v287, %v286
    %v289 = vmul.f32 0.5, %v288
    %v290 = vsub.f32 1.5, %v289
    %v291 = vmul.f32 %v286, %v290
    %v292 = vmul.f32 %v150, %v291
    %vm293 = vcmp.eq.f32.partialorder %v150, inf
    %v294 = vsel %vm293, %v150, %v292
    %vm295 = vcmp.eq.f32.partialorder %v150, 0.0
    %v296 = vand.u32 %v150, 2147483648
    %v297 = vsel %vm295, %v296, %v294
    %v298 = vrsqrt.pop %v153
    %v299 = vmul.f32 %v298, %v153
    %v300 = vmul.f32 %v299, %v298
    %v301 = vmul.f32 0.5, %v300
    %v302 = vsub.f32 1.5, %v301
    %v303 = vmul.f32 %v298, %v302
    %v304 = vmul.f32 %v153, %v303
    %vm305 = vcmp.eq.f32.partialorder %v153, inf
    %v306 = vsel %vm305, %v153, %v304
    %vm307 = vcmp.eq.f32.partialorder %v153, 0.0
    %v308 = vand.u32 %v153, 2147483648
    %v309 = vsel %vm307, %v308, %v306
    %v310 = vrsqrt.pop %v156
    %v311 = vmul.f32 %v310, %v156
    %v312 = vmul.f32 %v311, %v310
    %v313 = vmul.f32 0.5, %v312
    %v314 = vsub.f32 1.5, %v313
    %v315 = vmul.f32 %v310, %v314
    %v316 = vmul.f32 %v156, %v315
    %vm317 = vcmp.eq.f32.partialorder %v156, inf
    %v318 = vsel %vm317, %v156, %v316
    %vm319 = vcmp.eq.f32.partialorder %v156, 0.0
    %v320 = vand.u32 %v156, 2147483648
    %v321 = vsel %vm319, %v320, %v318
    %v322 = vrsqrt.pop %v159
    %v323 = vmul.f32 %v322, %v159
    %v324 = vmul.f32 %v323, %v322
    %v325 = vmul.f32 0.5, %v324
    %v326 = vsub.f32 1.5, %v325
    %v327 = vmul.f32 %v322, %v326
    %v328 = vmul.f32 %v159, %v327
    %vm329 = vcmp.eq.f32.partialorder %v159, inf
    %v330 = vsel %vm329, %v159, %v328
    %vm331 = vcmp.eq.f32.partialorder %v159, 0.0
    %v332 = vand.u32 %v159, 2147483648
    %v333 = vsel %vm331, %v332, %v330
    %v334 = vrsqrt.pop %v162
    %v335 = vmul.f32 %v334, %v162
    %v336 = vmul.f32 %v335, %v334
    %v337 = vmul.f32 0.5, %v336
    %v338 = vsub.f32 1.5, %v337
    %v339 = vmul.f32 %v334, %v338
    %v340 = vmul.f32 %v162, %v339
    %vm341 = vcmp.eq.f32.partialorder %v162, inf
    %v342 = vsel %vm341, %v162, %v340
    %vm343 = vcmp.eq.f32.partialorder %v162, 0.0
    %v344 = vand.u32 %v162, 2147483648
    %v345 = vsel %vm343, %v344, %v342
    %v346 = vrsqrt.pop %v165
    %v347 = vmul.f32 %v346, %v165
    %v348 = vmul.f32 %v347, %v346
    %v349 = vmul.f32 0.5, %v348
    %v350 = vsub.f32 1.5, %v349
    %v351 = vmul.f32 %v346, %v350
    %v352 = vmul.f32 %v165, %v351
    %vm353 = vcmp.eq.f32.partialorder %v165, inf
    %v354 = vsel %vm353, %v165, %v352
    %vm355 = vcmp.eq.f32.partialorder %v165, 0.0
    %v356 = vand.u32 %v165, 2147483648
    %v357 = vsel %vm355, %v356, %v354
    %v374 = vlaneseq
    %v375 = vand.u32 %v374, 127
    %v376 = vperm.slane %v177, %v375
    %v377 = vadd.s32 %v375, 4294967288
    %v378 = vperm.slane %v189, %v377
    %vm379 = vcmask 130112
    %v380 = vsel %vm379, %v378, %v376
    %v381 = vadd.s32 %v375, 4294967280
    %v382 = vperm.slane %v201, %v381
    %vm383 = vcmask 195712
    %v384 = vsel %vm383, %v382, %v380
    %v385 = vadd.s32 %v375, 4294967272
    %v386 = vperm.slane %v213, %v385
    %vm387 = vcmask 261312
    %v388 = vsel %vm387, %v386, %v384
    %v389 = vadd.s32 %v375, 4294967264
    %v390 = vperm.slane %v225, %v389
    %vm391 = vcmask 326912
    %v392 = vsel %vm391, %v390, %v388
    %v393 = vadd.s32 %v375, 4294967256
    %v394 = vperm.slane %v237, %v393
    %vm395 = vcmask 392512
    %v396 = vsel %vm395, %v394, %v392
    %v397 = vadd.s32 %v375, 4294967248
    %v398 = vperm.slane %v249, %v397
    %vm399 = vcmask 458112
    %v400 = vsel %vm399, %v398, %v396
    %v401 = vadd.s32 %v375, 4294967240
    %v402 = vperm.slane %v261, %v401
    %vm403 = vcmask 523712
    %v404 = vsel %vm403, %v402, %v400
    %v405 = vadd.s32 %v375, 4294967232
    %v406 = vperm.slane %v273, %v405
    %vm407 = vcmask 589312
    %v408 = vsel %vm407, %v406, %v404
    %v409 = vadd.s32 %v375, 4294967224
    %v410 = vperm.slane %v285, %v409
    %vm411 = vcmask 654912
    %v412 = vsel %vm411, %v410, %v408
    %v413 = vadd.s32 %v375, 4294967216
    %v414 = vperm.slane %v297, %v413
    %vm415 = vcmask 720512
    %v416 = vsel %vm415, %v414, %v412
    %v417 = vadd.s32 %v375, 4294967208
    %v418 = vperm.slane %v309, %v417
    %vm419 = vcmask 786112
    %v420 = vsel %vm419, %v418, %v416
    %v421 = vadd.s32 %v375, 4294967200
    %v422 = vperm.slane %v321, %v421
    %vm423 = vcmask 851712
    %v424 = vsel %vm423, %v422, %v420
    %v425 = vadd.s32 %v375, 4294967192
    %v426 = vperm.slane %v333, %v425
    %vm427 = vcmask 917312
    %v428 = vsel %vm427, %v426, %v424
    %v429 = vadd.s32 %v375, 4294967184
    %v430 = vperm.slane %v345, %v429
    %vm431 = vcmask 982912
    %v432 = vsel %vm431, %v430, %v428
    %v433 = vadd.s32 %v375, 4294967176
    %v434 = vperm.slane %v357, %v433
    %vm435 = vcmask 1048512
    %v436 = vsel %vm435, %v434, %v432
    %438 = vst [vmem:[#allocation12] sm:$0x1] %v436
    // Predicated region
    $region25: #{tpu_custom_call.1} parent=1 // pred_check
      _
    $region26: #{tpu_custom_call.1} parent=1 // pred_check_branch
      %440 = sbr.rel (0) target = $region28
    $region27: #{tpu_custom_call.1} parent=1 // pred_region
      %442 = vsyncadd [#allocation9], 0
      %s444 = sshll.u32 [#allocation12], 4
      %s445 = int_to_ptr.vmem [resolvable:$true] %s444
      %s446 = sshll.u32 %s5, 4
      %s447 = int_to_ptr.hbm [resolvable:$true] %s446
      %449 = dma.vmem_to_hbm [thread:$0]  %s445, 16, %s447, [#allocation9]
    $region28: #{tpu_custom_call.1} parent=1 // pred_fallthru
      _
    // Predicated region
    $region29: #{tpu_custom_call.1} parent=1 // pred_check
      _
    $region30: #{tpu_custom_call.1} parent=1 // pred_check_branch
      %451 = sbr.rel (0) target = $region32
    $region31: #{tpu_custom_call.1} parent=1 // pred_region
      %453 = dma.done [#allocation9], 16
    $region32: #{tpu_custom_call.1} parent=1 // pred_fallthru
      _
    %454 = vsyncpa [#allocation8], 1
    %455 = vsyncpa [#allocation11], 1
    %456 = vsyncpa [#allocation9], 1

</llo_original>
